<compile_context>
chip_gen: v6e
topology: v6e:2x2x1
jax: 0.10.0
libtpu: 0.0.40
codegen_flags: <defaults>
</compile_context>

<pallas_src>
import math

import jax
import jax.numpy as jnp
from jax import lax
from jax.experimental import pallas as pl
from jax.experimental.pallas import tpu as pltpu


# ----------------------------------------------------------------------------
# Pallas kernels
# ----------------------------------------------------------------------------
def _upconv_kernel_fast(x_ref, w_ref, b_ref, o_ref):
    # nk == 1: contract the whole Cin axis in one shot; no scratch accumulator.
    # Contracting dim 0 of both operands feeds the MXU with the "transposed"
    # LHS natively (NCHW input view is K-major), so no pre-transpose pass.
    acc = lax.dot_general(
        x_ref[...],
        w_ref[...],
        dimension_numbers=(((0,), (0,)), ((), ())),
        preferred_element_type=jnp.float32,
    )
    o_ref[...] = (acc + b_ref[...].astype(jnp.float32)).astype(o_ref.dtype)


def _upconv_kernel_ksplit(x_ref, w_ref, b_ref, o_ref, acc_ref):
    # x_ref:   (tile_k, tile_hw)
    # w_ref:   (tile_k, tile_n)
    # b_ref:   (1, tile_n)
    # o_ref:   (tile_hw, tile_n)
    # acc_ref: (tile_hw, tile_n) f32 scratch
    k = pl.program_id(3)

    @pl.when(k == 0)
    def _():
        # Seed the accumulator with the broadcast bias: the finalize becomes a
        # single cast+store (saves the extra add on the store-slot-bound v5e).
        acc_ref[...] = jnp.broadcast_to(
            b_ref[...].astype(jnp.float32), acc_ref.shape
        )

    acc_ref[...] += lax.dot_general(
        x_ref[...],
        w_ref[...],
        dimension_numbers=(((0,), (0,)), ((), ())),
        preferred_element_type=jnp.float32,
    )

    @pl.when(k == pl.num_programs(3) - 1)
    def _():
        o_ref[...] = acc_ref[...].astype(o_ref.dtype)


# ----------------------------------------------------------------------------
# Tiling heuristics
# ----------------------------------------------------------------------------
_MAX_M_TILE = 1024      # x-block lanes / out-block sublanes
_MAX_N_TILE = 1024      # weight/out-block lanes
_MAX_K_RESIDENT = 1024  # keep the whole weight resident (nk == 1) up to this Cin


def _largest_divisor_tile(total, max_tile, step):
    """Largest multiple-of-`step` divisor of `total` that is <= max_tile."""
    t = (min(max_tile, total) // step) * step
    while t > step:
        if total % t == 0:
            return t
        t -= step
    return step


def _choose_tiles(cin, hw, npad):
    # N (lane) tile: npad is always a multiple of 128.
    if npad <= _MAX_N_TILE:
        tile_n = npad
    else:
        tile_n = _largest_divisor_tile(npad, _MAX_N_TILE, 128)

    # K tile: prefer nk == 1 (weight resident + no accumulator round trip).
    if cin <= _MAX_K_RESIDENT or cin % 8 != 0:
        # TODO(synk): a huge Cin that is not 8-aligned would need K padding; in
        # practice UNet channel counts are 8-aligned and well below the cap.
        tile_k = cin
    else:
        tile_k = _largest_divisor_tile(cin, 512, 8)

    # M tile: lane dim of the x block, sublane dim of the out block.
    if hw <= _MAX_M_TILE:
        tile_hw = hw
    elif hw % 128 == 0:
        tile_hw = _largest_divisor_tile(hw, _MAX_M_TILE, 128)
    else:
        tile_hw = 512  # ragged last M tile; Pallas masks the edge block
    return tile_k, tile_hw, tile_n


# ----------------------------------------------------------------------------
# Wrapper: ConvTranspose2d with kernel_size == stride == scale_factor
# ----------------------------------------------------------------------------
def _transposed_conv_pallas(g, wf_padded, bf_padded, n_valid, cout, scale_factor):
    """g: (B, Cin, H, W) NCHW.  Returns (B, Cout, H*sy, W*sx)."""
    B, Cin, H, W = g.shape
    sy, sx = scale_factor
    HW = H * W
    Npad = wf_padded.shape[1]

    # Pure reshape of contiguous NCHW -- free view, no dtype upcast pass.
    x = g.reshape(B, Cin, HW)
    if wf_padded.dtype != x.dtype:
        # Weight is small: cast it to the activation dtype (not the other way).
        wf_padded = wf_padded.astype(x.dtype)

    tile_k, tile_hw, tile_n = _choose_tiles(Cin, HW, Npad)
    nk = pl.cdiv(Cin, tile_k)
    nm = pl.cdiv(HW, tile_hw)
    nn = Npad // tile_n

    # v7x has 2 TensorCores: make sure the parallel grid has >= 2 points.
    if B * nn * nm == 1 and HW % 256 == 0:
        tile_hw //= 2
        nm = 2

    in_b = x.dtype.itemsize
    w_b = wf_padded.dtype.itemsize
    b_b = bf_padded.dtype.itemsize
    out_b = x.dtype.itemsize

    # Per-step VMEM footprint (double-buffered inputs/outputs + accumulator).
    footprint = (
        2 * tile_k * tile_hw * in_b
        + 2 * tile_k * tile_n * w_b
        + 2 * tile_n * b_b
        + 2 * tile_hw * tile_n * out_b
        + (tile_hw * tile_n * 4 if nk > 1 else 0)
    )
    vmem_limit = int(min(max(2 * footprint + (4 << 20), 16 << 20), 48 << 20))

    kernel = _upconv_kernel_fast if nk == 1 else _upconv_kernel_ksplit
    scratch = [] if nk == 1 else [pltpu.VMEM((tile_hw, tile_n), jnp.float32)]

    # Weight HBM traffic: resident if (nk==1, nn==1); cycled per batch if only
    # N is tiled; streamed per (b, m) when K is tiled.
    if nk == 1 and nn == 1:
        w_reads = 1
    elif nk == 1:
        w_reads = B
    else:
        w_reads = B * nm

    out = pl.pallas_call(
        kernel,
        out_shape=jax.ShapeDtypeStruct((B, HW, Npad), x.dtype),
        grid_spec=pltpu.PrefetchScalarGridSpec(
            num_scalar_prefetch=0,
            grid=(B, nn, nm, nk),
            in_specs=[
                # g view (B, Cin, HW): batch squeezed, K block, M block.
                pl.BlockSpec((None, tile_k, tile_hw), lambda b, n, m, k: (b, k, m)),
                # weight (Cin, Npad): K block, N block.
                pl.BlockSpec((tile_k, tile_n), lambda b, n, m, k: (k, n)),
                # bias (1, Npad): N block.
                pl.BlockSpec((1, tile_n), lambda b, n, m, k: (0, n)),
            ],
            out_specs=pl.BlockSpec(
                (None, tile_hw, tile_n), lambda b, n, m, k: (b, m, n)
            ),
            scratch_shapes=scratch,
        ),
        compiler_params=pltpu.CompilerParams(
            dimension_semantics=("parallel", "parallel", "parallel", "arbitrary"),
            vmem_limit_bytes=vmem_limit,
        ),
        cost_estimate=pl.CostEstimate(
            flops=2 * B * HW * Cin * Npad,
            bytes_accessed=(
                in_b * B * Cin * HW
                + w_b * w_reads * Cin * Npad
                + out_b * B * HW * Npad
            ),
            transcendentals=0,
        ),
    )(x, wf_padded, bf_padded)

    # Drop the lane padding (fuses into the transpose copy under XLA; the
    # padding vanishes entirely for production-sized Cout*sy*sx), then scatter
    # (sy, sx) back into NCHW.
    if n_valid != Npad:
        out = out[:, :, :n_valid]
    out = out.reshape(B, H, W, cout, sy, sx)
    out = jnp.transpose(out, (0, 3, 1, 4, 2, 5)).reshape(B, cout, H * sy, W * sx)
    return out


# ----------------------------------------------------------------------------
# Crop helpers (static-shape glue, identical semantics to the PyTorch module)
# ----------------------------------------------------------------------------
def _crop(x, target_spatial, dims):
    shape = x.shape
    target = tuple(shape[:-dims]) + tuple(target_spatial)
    offsets = tuple((a - b) // 2 for a, b in zip(shape, target))
    slices = tuple(slice(o, o + s) for o, s in zip(offsets, target))
    return x[slices]


def _crop_to_factor(x, factor, kernel_sizes, dims):
    spatial = tuple(x.shape[-dims:])
    conv_crop = tuple(sum(ks[d] - 1 for ks in kernel_sizes) for d in range(dims))
    ns = tuple(
        int(math.floor(float(s - c) / f))
        for s, c, f in zip(spatial, conv_crop, factor)
    )
    target = tuple(n * f + c for n, c, f in zip(ns, conv_crop, factor))
    if target != spatial:
        assert all(t > c for t, c in zip(target, conv_crop)), (
            f"Feature map with shape {x.shape} is too small to ensure "
            f"translation equivariance with factor {factor} and following "
            f"convolutions {kernel_sizes}"
        )
        return _crop(x, target, dims)
    return x


# ----------------------------------------------------------------------------
# Upsample module (transposed_conv mode), forward-pass semantics of the
# PyTorch reference.
# ----------------------------------------------------------------------------
class Upsample:
    def __init__(
        self,
        scale_factor,
        mode="transposed_conv",
        in_channels=None,
        out_channels=None,
        crop_factor=None,
        next_conv_kernel_sizes=None,
        padding="valid",
        key=None,
        param_dtype=jnp.float32,
    ):
        assert (crop_factor is None) == (next_conv_kernel_sizes is None), (
            "crop_factor and next_conv_kernel_sizes have to be given together"
        )
        assert mode == "transposed_conv"
        self.crop_factor = crop_factor
        self.next_conv_kernel_sizes = next_conv_kernel_sizes
        self.dims = len(scale_factor)
        assert self.dims == 2, "this Pallas port implements the 2D case"
        self.scale_factor = tuple(scale_factor)
        self.padding = padding
        self.out_channels = out_channels

        # Deterministic parameter init (PyTorch-style uniform bounds; exact RNG
        # stream obviously differs from torch).
        k_w, k_b = jax.random.split(key)
        sy, sx = self.scale_factor
        fan_in = out_channels * sy * sx  # torch ConvTranspose fan_in convention
        bound = 1.0 / math.sqrt(fan_in)
        self.weight = jax.random.uniform(
            k_w, (in_channels, out_channels, sy, sx),
            minval=-bound, maxval=bound, dtype=param_dtype,
        )
        self.bias = jax.random.uniform(
            k_b, (out_channels,), minval=-bound, maxval=bound, dtype=param_dtype
        )

        # Precompute the flattened, lane-padded weight / bias once.
        n = out_channels * sy * sx
        n_pad = -(-n // 128) * 128
        wf = self.weight.reshape(in_channels, n)
        bf = jnp.repeat(self.bias, sy * sx).reshape(1, n)
        self._wf = jnp.pad(wf, ((0, 0), (0, n_pad - n)))
        self._bf = jnp.pad(bf, ((0, 0), (0, n_pad - n))).astype(jnp.float32)
        self._n_valid = n

    def _up(self, g_out):
        return _transposed_conv_pallas(
            g_out, self._wf, self._bf, self._n_valid,
            self.out_channels, self.scale_factor,
        )

    def forward(self, f_left, g_out):
        g_up = self._up(g_out)
        if self.next_conv_kernel_sizes is not None and self.padding == "valid":
            g_cropped = _crop_to_factor(
                g_up, self.crop_factor, self.next_conv_kernel_sizes, self.dims
            )
        else:
            g_cropped = g_up
        f_cropped = _crop(f_left, g_cropped.shape[-self.dims:], self.dims)
        return jnp.concatenate([f_cropped, g_cropped], axis=1)

    __call__ = forward


# ----------------------------------------------------------------------------
if __name__ == "__main__":
    key = jax.random.PRNGKey(0)
    k_f, k_g, k_params = jax.random.split(key, 3)

    B = 2
    in_channels = 8      # channels of g_out
    out_channels = 6     # channels after transposed conv
    f_channels = 6       # channels of the skip connection f_left
    scale_factor = (3, 3)

    # g_out: (2, 8, 5, 5) -> upsampled to (2, 6, 15, 15) -> cropped to (2, 6, 13, 13)
    g_out = jax.random.normal(k_g, (B, in_channels, 5, 5), dtype=jnp.float32)
    # f_left must be at least as large as the cropped upsampled map
    f_left = jax.random.normal(k_f, (B, f_channels, 17, 17), dtype=jnp.float32)

    up = Upsample(
        scale_factor=scale_factor,
        mode="transposed_conv",
        in_channels=in_channels,
        out_channels=out_channels,
        crop_factor=scale_factor,
        next_conv_kernel_sizes=[(3, 3), (3, 3)],
        padding="valid",
        key=k_params,
    )

    # Correctness check of the Pallas transposed conv against a pure-jnp reference.
    g_up = jax.block_until_ready(up._up(g_out))
    sy, sx = scale_factor
    ref6 = jnp.einsum("bihw,ioyx->bohywx", g_out, up.weight)
    ref = ref6 + up.bias[None, :, None, None, None, None]
    ref = ref.reshape(B, out_channels, g_out.shape[2] * sy, g_out.shape[3] * sx)
    assert g_up.shape == ref.shape, (g_up.shape, ref.shape)
    assert jnp.allclose(g_up, ref, atol=1e-5, rtol=1e-5), float(
        jnp.max(jnp.abs(g_up - ref))
    )

    out = up(f_left, g_out)
    out = jax.block_until_ready(out)

    # Expected output: concat along channels -> (2, 12, 13, 13)
    assert out.shape == (B, f_channels + out_channels, 13, 13), out.shape
    assert out.dtype == jnp.float32
    print("KERNEL_OK")
</pallas_src>

<mosaic_0001>
module attributes {stable_mosaic.version = 11 : i64} {
  func.func @_upconv_kernel_fast(%arg0: i32, %arg1: i32, %arg2: i32, %arg3: i32, %arg4: memref<1x8x25xf32, #tpu.memory_space<vmem>>, %arg5: memref<8x128xf32, #tpu.memory_space<vmem>>, %arg6: memref<1x128xf32, #tpu.memory_space<vmem>>, %arg7: memref<1x25x128xf32, #tpu.memory_space<vmem>>) attributes {dimension_semantics = [#tpu.dimension_semantics<parallel>, #tpu.dimension_semantics<parallel>, #tpu.dimension_semantics<parallel>, #tpu.dimension_semantics<arbitrary>], iteration_bounds = array<i64: 2, 1, 1, 1>, scalar_prefetch = 0 : i64, scratch_operands = 0 : i64, tpu.core_type = #tpu.core_type<tc>, window_params = [{transform_indices = @transform_0, window_bounds = array<i64: 1, 8, 25>}, {transform_indices = @transform_1, window_bounds = array<i64: 8, 128>}, {transform_indices = @transform_2, window_bounds = array<i64: 1, 128>}, {transform_indices = @transform_3, window_bounds = array<i64: 1, 25, 128>}]} {
    %c0 = arith.constant 0 : index
    %c0_0 = arith.constant 0 : index
    %c0_1 = arith.constant 0 : index
    %0 = vector.load %arg4[%c0, %c0_0, %c0_1] : memref<1x8x25xf32, #tpu.memory_space<vmem>>, vector<1x8x25xf32>
    %1 = vector.shape_cast %0 : vector<1x8x25xf32> to vector<8x25xf32>
    %c0_2 = arith.constant 0 : index
    %c0_3 = arith.constant 0 : index
    %2 = vector.load %arg5[%c0_2, %c0_3] : memref<8x128xf32, #tpu.memory_space<vmem>>, vector<8x128xf32>
    %cst = arith.constant dense<0.000000e+00> : vector<25x128xf32>
    %3 = tpu.matmul %1, %2, %cst {dimension_numbers = #tpu.dot_dimension_numbers<[0], [0], [1], [1], [0, 1, 1, 1], [], []>} : vector<8x25xf32>, vector<8x128xf32>, vector<25x128xf32> -> vector<25x128xf32>
    %c0_4 = arith.constant 0 : index
    %c0_5 = arith.constant 0 : index
    %4 = vector.load %arg6[%c0_4, %c0_5] : memref<1x128xf32, #tpu.memory_space<vmem>>, vector<1x128xf32>
    %5 = vector.broadcast %4 : vector<1x128xf32> to vector<25x128xf32>
    %6 = arith.addf %3, %5 : vector<25x128xf32>
    %c0_6 = arith.constant 0 : index
    %c0_7 = arith.constant 0 : index
    %c0_8 = arith.constant 0 : index
    %7 = vector.load %arg7[%c0_6, %c0_7, %c0_8] : memref<1x25x128xf32, #tpu.memory_space<vmem>>, vector<1x25x128xf32>
    %8 = vector.shape_cast %7 : vector<1x25x128xf32> to vector<25x128xf32>
    %9 = vector.shape_cast %6 : vector<25x128xf32> to vector<1x25x128xf32>
    tpu.vector_store %arg7[%c0_6, %c0_7, %c0_8], %9 {strides = array<i32>} : memref<1x25x128xf32, #tpu.memory_space<vmem>>, vector<1x25x128xf32>,
    return
  }
  func.func @transform_0(%arg0: i32, %arg1: i32, %arg2: i32, %arg3: i32) -> (i32, i32, i32) {
    %c0_i32 = arith.constant 0 : i32
    return %arg0, %arg3, %arg2 : i32, i32, i32
  }
  func.func @transform_1(%arg0: i32, %arg1: i32, %arg2: i32, %arg3: i32) -> (i32, i32) {
    %c0_i32 = arith.constant 0 : i32
    return %arg3, %arg1 : i32, i32
  }
  func.func @transform_2(%arg0: i32, %arg1: i32, %arg2: i32, %arg3: i32) -> (i32, i32) {
    %c0_i32 = arith.constant 0 : i32
    %c0_i32_0 = arith.constant 0 : i32
    return %c0_i32, %arg1 : i32, i32
  }
  func.func @transform_3(%arg0: i32, %arg1: i32, %arg2: i32, %arg3: i32) -> (i32, i32, i32) {
    %c0_i32 = arith.constant 0 : i32
    return %arg0, %arg2, %arg1 : i32, i32, i32
  }
}

</mosaic_0001>

<llo_original>
// kernel: tpu_custom_call.1
$region0: #{tpu_custom_call.1}
  #allocation0 [shape = 'u32[]', space=smem, size = 0x4, offset = 0x4, fixed_abs, tag = 'smem constant byte address 0x4 - core index']
  #allocation1 [shape = 'u32[144,128]{1,0:T(1,128)}', space=vmem, size = 0x12000, scoped, tag = 'internal scratch']
  %s0 = inlined_call_operand.hbm [shape: f32[2,8,25], index: 0, kind: input, shape index: {}]
  %s1 = inlined_call_operand.hbm [shape: f32[8,128], index: 1, kind: input, shape index: {}]
  %s2 = inlined_call_operand.vmem [shape: f32[1,128], index: 2, kind: input, shape index: {}]
  %s3 = inlined_call_operand.vmem [shape: f32[2,25,128], index: 3, kind: output, shape index: {}]
  %s4 = sld [smem:[#allocation0]]
  $region53: #{tpu_custom_call.1} parent=0
    _
  %s6 = ssub.s32 1, %s4
  %s7 = scalar_select 0, %s6, %s4
  $region1: #{tpu_custom_call.1} parent=0
    #allocation2 [shape = 'u8[8192]{0}', space=vmem, size = 0x2000, scoped, tag = 'input window, operand 0']
    #allocation3 [shape = 's32[2]{0}', space=sflag, size = 0x8, scoped, tag = 'scoped memory for tpu_custom_call.1']
    #allocation4 [shape = 'u8[4096]{0}', space=vmem, size = 0x1000, scoped, tag = 'input window, operand 1, single buffered']
    #allocation5 [shape = 's32[1]{0}', space=sflag, size = 0x4, scoped, tag = 'scoped memory for tpu_custom_call.1']
    %8 = vsyncpa [#allocation3], 0
    %s9 = scalar_lea.sflag [#allocation3], 1
    %10 = vsyncpa %s9, 0
    %11 = vsyncpa [#allocation5], 0
    loop: start=0, step=1, limit=4
    $region2: #{tpu_custom_call.1} parent=1 // loop_pre_header
      _
    $region3: #{tpu_custom_call.1} parent=1 // loop_header
      %s13 = sphi 0, %s17
      %p14 = scmp.ge.s32.totalorder %s13, 4
      %s20 = sphi 0, %s46
      %s21 = sphi 0, %s42
      %s22 = sphi 0, %s38
      %s23 = sphi 0, %s34
      %s24 = sphi 0, %s20
      %s25 = sphi 0, %s21
      %s26 = sphi 0, %s22
      %s27 = sphi 0, %s23
      %s28 = sphi 0, %s24
      %s29 = sphi 0, %s25
      %s30 = sphi 0, %s26
      %s31 = sphi 0, %s27
      %s53 = sphi 0, %s55
      %s56 = sphi 0, %s53
      %s57 = sphi 0, %s56
      %s73 = sphi 0, %s57
      %s81 = sphi 0, %s83
      %s84 = sphi 0, %s81
      %s85 = sphi 0, %s84
      %s101 = sphi 0, %s85
      %s107 = sphi 0, %s109
      %s110 = sphi 0, %s107
      %s111 = sphi 0, %s110
      %s127 = sphi 0, %s111
      %s137 = sphi 0, %s139
      %s140 = sphi 0, %s137
      %s141 = sphi 0, %s140
      %s157 = sphi 0, %s141
    $region4: #{tpu_custom_call.1} parent=1 // loop_header_branch
      %16 = sbr.rel (%p14) target = $region8
    $region5: #{tpu_custom_call.1} parent=1 // loop_body
      %s18 = ssub.s32 %s13, 1
      %s19 = ssub.s32 %s13, 2
      %s32 = sadd.s32 1, %s23
      %p33 = scmp.ge.s32.totalorder %s32, 1
      %s34 = scalar_select %p33, 0, %s32
      %s35 = sadd.s32 1, %s22
      %s36 = scalar_select %p33, %s35, %s22
      %p37 = scmp.ge.s32.totalorder %s36, 1
      %s38 = scalar_select %p37, 0, %s36
      %s39 = sadd.s32 1, %s21
      %s40 = scalar_select %p37, %s39, %s21
      %p41 = scmp.ge.s32.totalorder %s40, 1
      %s42 = scalar_select %p41, 0, %s40
      %s43 = sadd.s32 1, %s20
      %s44 = scalar_select %p41, %s43, %s20
      %p45 = scmp.ge.s32.totalorder %s44, 2
      %s46 = scalar_select %p45, 0, %s44
      %s47 = ssub.s32 %s20, %s46
      %s48 = ssub.s32 %s23, %s34
      %s49 = sor.u32 %s47, %s48
      %s50 = ssub.s32 %s22, %s38
      %s51 = sor.u32 %s49, %s50
      %p52 = scmp.eq.s32.totalorder %s51, 0
      %s54 = sadd.s32 %s53, 1
      %s55 = scalar_select %p52, %s53, %s54
      %p58 = pneg %p52
      %p59 = scmp.eq.s32.totalorder %s13, 1
      %p60 = por %p58, %p59
      %p61 = scmp.ne.s32.totalorder %s53, %s56
      %p62 = scmp.eq.s32.totalorder %s13, 0
      %p63 = por %p61, %p62
      %p64 = scmp.ne.s32.totalorder %s53, %s56
      %p65 = scmp.eq.s32.totalorder %s18, 1
      %p66 = por %p64, %p65
      %p67 = scmp.ne.s32.totalorder %s56, %s57
      %p68 = scmp.eq.s32.totalorder %s18, 0
      %p69 = por %p67, %p68
      %p70 = scmp.ne.s32.totalorder %s56, %s57
      %p71 = scmp.eq.s32.totalorder %s19, 1
      %p72 = por %p70, %p71
      %p74 = scmp.ne.s32.totalorder %s57, %s73
      %p75 = scmp.eq.s32.totalorder %s19, 0
      %p76 = por %p74, %p75
      %s77 = ssub.s32 %s23, %s34
      %s78 = ssub.s32 %s21, %s42
      %s79 = sor.u32 %s77, %s78
      %p80 = scmp.eq.s32.totalorder %s79, 0
      %s82 = sadd.s32 %s81, 1
      %s83 = scalar_select %p80, %s81, %s82
      %p86 = pneg %p80
      %p87 = scmp.eq.s32.totalorder %s13, 1
      %p88 = por %p86, %p87
      %p89 = scmp.ne.s32.totalorder %s81, %s84
      %p90 = scmp.eq.s32.totalorder %s13, 0
      %p91 = por %p89, %p90
      %p92 = scmp.ne.s32.totalorder %s81, %s84
      %p93 = scmp.eq.s32.totalorder %s18, 1
      %p94 = por %p92, %p93
      %p95 = scmp.ne.s32.totalorder %s84, %s85
      %p96 = scmp.eq.s32.totalorder %s18, 0
      %p97 = por %p95, %p96
      %p98 = scmp.ne.s32.totalorder %s84, %s85
      %p99 = scmp.eq.s32.totalorder %s19, 1
      %p100 = por %p98, %p99
      %p102 = scmp.ne.s32.totalorder %s85, %s101
      %p103 = scmp.eq.s32.totalorder %s19, 0
      %p104 = por %p102, %p103
      %s105 = ssub.s32 %s21, %s42
      %p106 = scmp.eq.s32.totalorder %s105, 0
      %s108 = sadd.s32 %s107, 1
      %s109 = scalar_select %p106, %s107, %s108
      %p112 = pneg %p106
      %p113 = scmp.eq.s32.totalorder %s13, 1
      %p114 = por %p112, %p113
      %p115 = scmp.ne.s32.totalorder %s107, %s110
      %p116 = scmp.eq.s32.totalorder %s13, 0
      %p117 = por %p115, %p116
      %p118 = scmp.ne.s32.totalorder %s107, %s110
      %p119 = scmp.eq.s32.totalorder %s18, 1
      %p120 = por %p118, %p119
      %p121 = scmp.ne.s32.totalorder %s110, %s111
      %p122 = scmp.eq.s32.totalorder %s18, 0
      %p123 = por %p121, %p122
      %p124 = scmp.ne.s32.totalorder %s110, %s111
      %p125 = scmp.eq.s32.totalorder %s19, 1
      %p126 = por %p124, %p125
      %p128 = scmp.ne.s32.totalorder %s111, %s127
      %p129 = scmp.eq.s32.totalorder %s19, 0
      %p130 = por %p128, %p129
      %s131 = ssub.s32 %s20, %s46
      %s132 = ssub.s32 %s22, %s38
      %s133 = sor.u32 %s131, %s132
      %s134 = ssub.s32 %s21, %s42
      %s135 = sor.u32 %s133, %s134
      %p136 = scmp.eq.s32.totalorder %s135, 0
      %s138 = sadd.s32 %s137, 1
      %s139 = scalar_select %p136, %s137, %s138
      %p142 = pneg %p136
      %p143 = scmp.eq.s32.totalorder %s13, 1
      %p144 = por %p142, %p143
      %p145 = scmp.ne.s32.totalorder %s137, %s140
      %p146 = scmp.eq.s32.totalorder %s13, 0
      %p147 = por %p145, %p146
      %p148 = scmp.ne.s32.totalorder %s137, %s140
      %p149 = scmp.eq.s32.totalorder %s18, 1
      %p150 = por %p148, %p149
      %p151 = scmp.ne.s32.totalorder %s140, %s141
      %p152 = scmp.eq.s32.totalorder %s18, 0
      %p153 = por %p151, %p152
      %p154 = scmp.ne.s32.totalorder %s140, %s141
      %p155 = scmp.eq.s32.totalorder %s19, 1
      %p156 = por %p154, %p155
      %p158 = scmp.ne.s32.totalorder %s141, %s157
      %p159 = scmp.eq.s32.totalorder %s19, 0
      %p160 = por %p158, %p159
      %p161 = scmp.le.s32.totalorder 1, %s13
      %p162 = scmp.lt.s32.totalorder %s13, 3
      %p163 = pnand %p161, %p162
      %p164 = pneg %p163
      // Predicated region
      $region9: #{tpu_custom_call.1} parent=5 // pred_check
        _
      $region10: #{tpu_custom_call.1} parent=5 // pred_check_branch
        %166 = sbr.rel (%p163) target = $region12
      $region11: #{tpu_custom_call.1} parent=5 // pred_region
        %s167 = ssub.s32 %s13, 1
        // Predicated region
        $region13: #{tpu_custom_call.1} parent=11 // pred_check
          %p168 = pneg %p97
        $region14: #{tpu_custom_call.1} parent=11 // pred_check_branch
          %170 = sbr.rel (%p168) target = $region16
        $region15: #{tpu_custom_call.1} parent=11 // pred_region
          %s172 = ssub.s32 128, 128
          %173 = vsyncadd [#allocation5], %s172
          %s174 = sadd.s32 %s25, %s27
          %s175 = smul.addr %s174, 128
          %s176 = scalar_lea.hbm %s1, %s175
          %s178 = sshll.u32 [#allocation4], 4
          %s179 = int_to_ptr.vmem [resolvable:$true] %s178
          %181 = dma.hbm_to_vmem [thread:$0]  %s176, 128, %s179, [#allocation5]
        $region16: #{tpu_custom_call.1} parent=11 // pred_fallthru
          _
        // Predicated region
        $region17: #{tpu_custom_call.1} parent=11 // pred_check
          %p182 = pneg %p123
        $region18: #{tpu_custom_call.1} parent=11 // pred_check_branch
          %184 = sbr.rel (%p182) target = $region20
        $region19: #{tpu_custom_call.1} parent=11 // pred_region
          %p185 = scmp.lt.s32.totalorder %s25, 0
          %s186 = scalar_select %p185, %s25, 0
          %s187 = scalar_lea.vmem %s2, %s186
        $region20: #{tpu_custom_call.1} parent=11 // pred_fallthru
          _
      $region12: #{tpu_custom_call.1} parent=5 // pred_fallthru
        _
      %p188 = scmp.lt.s32.totalorder %s13, 2
      // Predicated region
      $region21: #{tpu_custom_call.1} parent=5 // pred_check
        %p189 = pneg %p188
      $region22: #{tpu_custom_call.1} parent=5 // pred_check_branch
        %191 = sbr.rel (%p189) target = $region24
      $region23: #{tpu_custom_call.1} parent=5 // pred_region
        // Predicated region
        $region25: #{tpu_custom_call.1} parent=23 // pred_check
          %p192 = pneg %p63
        $region26: #{tpu_custom_call.1} parent=23 // pred_check_branch
          %194 = sbr.rel (%p192) target = $region28
        $region27: #{tpu_custom_call.1} parent=23 // pred_region
          %s195 = sand.u32 %s53, 1
          %s196 = scalar_lea.sflag [#allocation3], %s195
          %s197 = sand.u32 %s53, 1
          %s198 = smul.addr %s197, 8
          %s199 = scalar_lea.vmem [#allocation2], %s198
          %s201 = ssub.s32 128, 128
          %202 = vsyncadd %s196, %s201
          %s203 = sadd.s32 %s22, %s23
          %s204 = sadd.s32 %s203, %s20
          %s205 = smul.addr %s204, 128
          %s206 = scalar_lea.hbm %s0, %s205
          %s208 = sshll.u32 %s199, 4
          %s209 = int_to_ptr.vmem [resolvable:$true] %s208
          %211 = dma.hbm_to_vmem [thread:$0]  %s206, 128, %s209, %s196
        $region28: #{tpu_custom_call.1} parent=23 // pred_fallthru
          _
      $region24: #{tpu_custom_call.1} parent=5 // pred_fallthru
        _
      %p212 = scmp.le.s32.totalorder 1, %s13
      %p213 = scmp.lt.s32.totalorder %s13, 3
      %p214 = pnand %p212, %p213
      %p215 = pneg %p214
      // Predicated region
      $region29: #{tpu_custom_call.1} parent=5 // pred_check
        _
      $region30: #{tpu_custom_call.1} parent=5 // pred_check_branch
        %217 = sbr.rel (%p214) target = $region32
      $region31: #{tpu_custom_call.1} parent=5 // pred_region
        %s218 = ssub.s32 %s13, 1
        %s219 = sand.u32 %s56, 1
        %s220 = scalar_lea.sflag [#allocation3], %s219
        %s221 = sand.u32 %s56, 1
        %s222 = smul.addr %s221, 8
        %s223 = scalar_lea.vmem [#allocation2], %s222
        // Predicated region
        $region33: #{tpu_custom_call.1} parent=31 // pred_check
          %p224 = pneg %p69
        $region34: #{tpu_custom_call.1} parent=31 // pred_check_branch
          %226 = sbr.rel (%p224) target = $region36
        $region35: #{tpu_custom_call.1} parent=31 // pred_region
          %227 = dma.done %s220, 128
        $region36: #{tpu_custom_call.1} parent=31 // pred_fallthru
          _
        // Predicated region
        $region37: #{tpu_custom_call.1} parent=31 // pred_check
          %p228 = pneg %p97
        $region38: #{tpu_custom_call.1} parent=31 // pred_check_branch
          %230 = sbr.rel (%p228) target = $region40
        $region39: #{tpu_custom_call.1} parent=31 // pred_region
          %231 = dma.done [#allocation5], 128
        $region40: #{tpu_custom_call.1} parent=31 // pred_fallthru
          _
        %s232 = sand.u32 %s56, 1
        %s233 = scalar_lea.sflag [#allocation3], %s232
        %s234 = sand.u32 %s56, 1
        %s235 = smul.addr %s234, 8
        %s236 = scalar_lea.vmem [#allocation2], %s235
        %p237 = pneg %p69
        %p238 = pneg %p66
        %p239 = pneg %p97
        %p240 = pneg %p94
        %p241 = scmp.lt.s32.totalorder %s25, 0
        %s242 = scalar_select %p241, %s25, 0
        %s243 = scalar_lea.vmem %s2, %s242
        %p244 = pneg %p123
        %p245 = pneg %p120
        %p246 = pneg %p153
        %p247 = pneg %p150
        %s248 = smul.u32 4, %s26
        %p249 = scmp.lt.s32.totalorder %s24, 1
        %s250 = scalar_select %p249, %s24, 1
        %p251 = scmp.lt.s32.totalorder %s248, 3
        %s252 = scalar_select %p251, %s248, 3
        %p253 = scmp.lt.s32.totalorder %s25, 0
        %s254 = scalar_select %p253, %s25, 0
        %s255 = sadd.s32 %s254, %s252
        %s256 = smul.addr %s250, 4
        %s257 = sadd.s32 %s255, %s256
        %s258 = smul.addr %s257, 8
        %s259 = scalar_lea.vmem %s3, %s258
        %p260 = scmp.lt.s32.totalorder %s25, 0
        %s261 = scalar_select %p260, %s25, 0
        %s262 = scalar_lea.vmem %s2, %s261
        %s263 = smul.u32 4, %s26
        %p264 = scmp.lt.s32.totalorder %s24, 1
        %s265 = scalar_select %p264, %s24, 1
        %p266 = scmp.lt.s32.totalorder %s263, 3
        %s267 = scalar_select %p266, %s263, 3
        %p268 = scmp.lt.s32.totalorder %s25, 0
        %s269 = scalar_select %p268, %s25, 0
        %s270 = sadd.s32 %s269, %s267
        %s271 = smul.addr %s265, 4
        %s272 = sadd.s32 %s270, %s271
        %s273 = smul.addr %s272, 8
        %s274 = scalar_lea.vmem %s3, %s273
        %s275 = smul.u32 4, %s26
        %v276 = vld [vmem:[%s223] sm:$0xff]
        %v277 = vld [vmem:[#allocation4] sm:$0xff]
        %v278 = vld [vmem:[%s262] sm:$0x1]
        %v280 = vlaneseq
        %v281 = vshrl.u32 %v280, 7
        %v282 = vsub.s32 0, %v281
        %v283 = vrot.slane %v278, %v282
        %285 = vxpose.xlu0.b32.start [1/16] %v276, 128
        %286 = vxpose.xlu0.b32.cont [2/16] 0.0, 128
        %287 = vxpose.xlu0.b32.cont [3/16] 0.0, 128
        %288 = vxpose.xlu0.b32.cont [4/16] 0.0, 128
        %289 = vxpose.xlu0.b32.cont [5/16] 0.0, 128
        %290 = vxpose.xlu0.b32.cont [6/16] 0.0, 128
        %291 = vxpose.xlu0.b32.cont [7/16] 0.0, 128
        %292 = vxpose.xlu0.b32.cont [8/16] 0.0, 128
        %293 = vxpose.xlu0.b32.cont [9/16] 0.0, 128
        %294 = vxpose.xlu0.b32.cont [10/16] 0.0, 128
        %295 = vxpose.xlu0.b32.cont [11/16] 0.0, 128
        %296 = vxpose.xlu0.b32.cont [12/16] 0.0, 128
        %297 = vxpose.xlu0.b32.cont [13/16] 0.0, 128
        %298 = vxpose.xlu0.b32.cont [14/16] 0.0, 128
        %299 = vxpose.xlu0.b32.cont [15/16] 0.0, 128
        %300 = vxpose.xlu0.b32.end [16/16] 0.0, 128
        %v301 = vpop.trf.xlu0
        %v302 = vpop.trf.xlu0
        %v303 = vpop.trf.xlu0
        %v304 = vpop.trf.xlu0
        %v305 = vpop.trf.xlu0
        %v306 = vpop.trf.xlu0
        %v307 = vpop.trf.xlu0
        %v308 = vpop.trf.xlu0
        %v309 = vpop.trf.xlu0
        %v310 = vpop.trf.xlu0
        %v311 = vpop.trf.xlu0
        %v312 = vpop.trf.xlu0
        %v313 = vpop.trf.xlu0
        %v314 = vpop.trf.xlu0
        %v315 = vpop.trf.xlu0
        %v316 = vpop.trf.xlu0
        %vm317 = vcmask 64512
        %v319 = vsel %vm317, %v301, 0
        %v322 = vsel %vm317, %v302, 0
        %v325 = vsel %vm317, %v303, 0
        %v328 = vsel %vm317, %v304, 0
        %330 = vmatprep.subr.mxu0 0.0
        %331 = vmatpush1.msra.mxu0 0.0
        %332 = vmatprep.subr.mxu0 0.0
        %333 = vmatpush1.msra.mxu0 0.0
        %334 = vmatprep.subr.mxu0 0.0
        %335 = vmatpush1.msra.mxu0 0.0
        %336 = vmatprep.subr.mxu0 0.0
        %337 = vmatpush1.msra.mxu0 0.0
        %338 = vmatprep.subr.mxu0 0.0
        %339 = vmatpush1.msra.mxu0 0.0
        %340 = vmatprep.subr.mxu0 0.0
        %341 = vmatpush1.msra.mxu0 0.0
        %342 = vmatprep.subr.mxu0 0.0
        %343 = vmatpush1.msra.mxu0 0.0
        %344 = vmatprep.subr.mxu0 0.0
        %345 = vmatpush1.msra.mxu0 0.0
        %346 = vmatprep.subr.mxu0 0.0
        %347 = vmatpush1.msra.mxu0 0.0
        %348 = vmatprep.subr.mxu0 0.0
        %349 = vmatpush1.msra.mxu0 0.0
        %350 = vmatprep.subr.mxu0 0.0
        %351 = vmatpush1.msra.mxu0 0.0
        %352 = vmatprep.subr.mxu0 0.0
        %353 = vmatpush1.msra.mxu0 0.0
        %354 = vmatprep.subr.mxu0 0.0
        %355 = vmatpush1.msra.mxu0 0.0
        %356 = vmatprep.subr.mxu0 0.0
        %357 = vmatpush1.msra.mxu0 0.0
        %358 = vmatprep.subr.mxu0 0.0
        %359 = vmatpush1.msra.mxu0 0.0
        %360 = vmatprep.subr.mxu0 0.0
        %361 = vmatpush1.msra.mxu0 %v277
        %362 = vmatprep.subr.mxu0 0.0
        %363 = vmatpush2.msra.mxu0 0.0
        %364 = vmatprep.subr.mxu0 0.0
        %365 = vmatpush2.msra.mxu0 0.0
        %366 = vmatprep.subr.mxu0 0.0
        %367 = vmatpush2.msra.mxu0 0.0
        %368 = vmatprep.subr.mxu0 0.0
        %369 = vmatpush2.msra.mxu0 0.0
        %370 = vmatprep.subr.mxu0 0.0
        %371 = vmatpush2.msra.mxu0 0.0
        %372 = vmatprep.subr.mxu0 0.0
        %373 = vmatpush2.msra.mxu0 0.0
        %374 = vmatprep.subr.mxu0 0.0
        %375 = vmatpush2.msra.mxu0 0.0
        %376 = vmatprep.subr.mxu0 0.0
        %377 = vmatpush2.msra.mxu0 0.0
        %378 = vmatprep.subr.mxu0 0.0
        %379 = vmatpush2.msra.mxu0 0.0
        %380 = vmatprep.subr.mxu0 0.0
        %381 = vmatpush2.msra.mxu0 0.0
        %382 = vmatprep.subr.mxu0 0.0
        %383 = vmatpush2.msra.mxu0 0.0
        %384 = vmatprep.subr.mxu0 0.0
        %385 = vmatpush2.msra.mxu0 0.0
        %386 = vmatprep.subr.mxu0 0.0
        %387 = vmatpush2.msra.mxu0 0.0
        %388 = vmatprep.subr.mxu0 0.0
        %389 = vmatpush2.msra.mxu0 0.0
        %390 = vmatprep.subr.mxu0 0.0
        %391 = vmatpush2.msra.mxu0 0.0
        %392 = vmatprep.subr.mxu0 0.0
        %393 = vmatpush2.msra.mxu0 0.0
        %394 = vmatprep.mubr.f32.mxu0 0.0
        %395 = vmatmul.mubr.f32.gmra.mxu0 %v319
        %v396 = vpop.f32.mrf.mxu0
        %v397 = vadd.f32 %v283, %v396
        %v398 = vpop.f32.mrf.mxu0
        %399 = vmatprep.mubr.f32.mxu0 0.0
        %400 = vmatmul.mubr.f32.gmra.mxu0 %v322
        %v401 = vpop.f32.mrf.mxu0
        %v402 = vadd.f32 %v283, %v401
        %v403 = vpop.f32.mrf.mxu0
        %404 = vmatprep.mubr.f32.mxu0 0.0
        %405 = vmatmul.mubr.f32.gmra.mxu0 %v325
        %v406 = vpop.f32.mrf.mxu0
        %v407 = vadd.f32 %v283, %v406
        %v408 = vpop.f32.mrf.mxu0
        %409 = vmatprep.mubr.f32.mxu0 0.0
        %410 = vmatmul.mubr.f32.gmra.mxu0 %v328
        %v411 = vpop.f32.mrf.mxu0
        %v412 = vadd.f32 %v283, %v411
        %v413 = vpop.f32.mrf.mxu0
        %414 = vdwg.mxu0
        %415 = vst [vmem:[%s274] sm:$0xff] %v397
        %416 = vst [vmem:[%s274 + $0x8] sm:$0xff] %v402
        %417 = vst [vmem:[%s274 + $0x10] sm:$0xff] %v407
        %418 = vst [vmem:[%s274 + $0x18] sm:$0x1] %v412
        %s419 = smul.u32 4, %s26
        %p420 = scmp.lt.s32.totalorder %s24, 1
        %s421 = scalar_select %p420, %s24, 1
        %p422 = scmp.lt.s32.totalorder %s419, 3
        %s423 = scalar_select %p422, %s419, 3
        %p424 = scmp.lt.s32.totalorder %s25, 0
        %s425 = scalar_select %p424, %s25, 0
        %s426 = sadd.s32 %s425, %s423
        %s427 = smul.addr %s421, 4
        %s428 = sadd.s32 %s426, %s427
        %s429 = smul.addr %s428, 8
        %s430 = scalar_lea.vmem %s3, %s429
        // Predicated region
        $region41: #{tpu_custom_call.1} parent=31 // pred_check
          %p431 = pneg %p150
        $region42: #{tpu_custom_call.1} parent=31 // pred_check_branch
          %433 = sbr.rel (%p431) target = $region44
        $region43: #{tpu_custom_call.1} parent=31 // pred_region
          %s434 = smul.u32 4, %s26
        $region44: #{tpu_custom_call.1} parent=31 // pred_fallthru
          _
      $region32: #{tpu_custom_call.1} parent=5 // pred_fallthru
        _
      %p435 = scmp.le.s32.totalorder 2, %s13
      // Predicated region
      $region45: #{tpu_custom_call.1} parent=5 // pred_check
        %p436 = pneg %p435
      $region46: #{tpu_custom_call.1} parent=5 // pred_check_branch
        %438 = sbr.rel (%p436) target = $region48
      $region47: #{tpu_custom_call.1} parent=5 // pred_region
        %s439 = ssub.s32 %s13, 2
        // Predicated region
        $region49: #{tpu_custom_call.1} parent=47 // pred_check
          %p440 = pneg %p156
        $region50: #{tpu_custom_call.1} parent=47 // pred_check_branch
          %442 = sbr.rel (%p440) target = $region52
        $region51: #{tpu_custom_call.1} parent=47 // pred_region
          %s443 = smul.u32 4, %s30
          %p444 = scmp.lt.s32.totalorder %s28, 1
          %s445 = scalar_select %p444, %s28, 1
          %p446 = scmp.lt.s32.totalorder %s443, 3
          %s447 = scalar_select %p446, %s443, 3
          %p448 = scmp.lt.s32.totalorder %s29, 0
          %s449 = scalar_select %p448, %s29, 0
          %s450 = sadd.s32 %s449, %s447
          %s451 = smul.addr %s445, 4
          %s452 = sadd.s32 %s450, %s451
          %s453 = smul.addr %s452, 8
          %s454 = scalar_lea.vmem %s3, %s453
        $region52: #{tpu_custom_call.1} parent=47 // pred_fallthru
          _
      $region48: #{tpu_custom_call.1} parent=5 // pred_fallthru
        _
    $region6: #{tpu_custom_call.1} parent=1 // loop_footer
      %s17 = sadd.s32 1, %s13
    $region7: #{tpu_custom_call.1} parent=1 // loop_footer_branch
      %12 = sbr.rel target = $region3
    $region8: #{tpu_custom_call.1} parent=1 // loop_exit
      _
    %455 = vsyncpa [#allocation3], 1
    %s456 = scalar_lea.sflag [#allocation3], 1
    %457 = vsyncpa %s456, 1
    %458 = vsyncpa [#allocation5], 1

</llo_original>
